<compile_context>
chip_gen: v6e
topology: v6e:2x2x1
jax: 0.10.0
libtpu: 0.0.40
codegen_flags: <defaults>
</compile_context>

<pallas_src>
import functools

import jax
import jax.numpy as jnp
from jax.experimental import pallas as pl
from jax.experimental.pallas import tpu as pltpu


def actor_kernel(state_ref, w1_ref, b1_ref, w2_ref, b2_ref, out_ref):
    # ---- fc1: bf16 MXU matmul, f32 accumulate ----
    x = state_ref[...].astype(jnp.bfloat16)                        # [TB, D_in]
    h = jnp.dot(x, w1_ref[...], preferred_element_type=jnp.float32)
    h = jnp.maximum(h + b1_ref[...], 0.0)                          # f32 bias + ReLU (VPU)

    # ---- pi head: bf16 MXU matmul, f32 accumulate ----
    logits = jnp.dot(h.astype(jnp.bfloat16), w2_ref[...],
                     preferred_element_type=jnp.float32)
    logits = logits + b2_ref[...]                                  # padded lanes get -1e30

    # ---- numerically-stable softmax over the (lane-dense, padded) last dim ----
    m = jnp.max(logits, axis=-1, keepdims=True)
    e = jnp.exp(logits - m)                                        # padded lanes -> exp(-huge) == 0
    denom = jnp.sum(e, axis=-1, keepdims=True)
    # Exact divide: denom is [TB, 1], cost negligible; rows sum to exactly 1.
    out_ref[...] = e / denom


def _round_up(x, m):
    return (x + m - 1) // m * m


def prepare_actor_params(w1, b1, w2, b2):
    """One-time parameter prep (re-run only after optimizer updates).

    Pads the action dim to a multiple of 128 lanes (padded weight columns are
    exactly zero and padded biases are -1e30, so padded actions get exactly
    zero softmax mass), casts weights to bf16, and reshapes biases to [1, F].

    Returns (w1_bf16 [D_in,F1], b1_f32 [1,F1], w2_bf16 [F1,A_pad],
             b2_f32 [1,A_pad], n_actions).
    """
    w1 = jnp.asarray(w1, jnp.float32)
    w2 = jnp.asarray(w2, jnp.float32)
    D_in, F1 = w1.shape
    assert w2.shape[0] == F1
    A = w2.shape[1]

    A_pad = _round_up(max(A, 128), 128)
    w2_p = jnp.zeros((F1, A_pad), jnp.float32).at[:, :A].set(w2)
    b2_p = jnp.full((1, A_pad), -1e30, jnp.float32).at[:, :A].set(
        jnp.reshape(jnp.asarray(b2, jnp.float32), (1, A)))

    return (w1.astype(jnp.bfloat16),
            jnp.reshape(jnp.asarray(b1, jnp.float32), (1, F1)),
            w2_p.astype(jnp.bfloat16),   # padded cols stay exactly 0 in bf16
            b2_p,
            A)


@functools.partial(jax.jit,
                   static_argnames=("n_actions", "block_b", "vmem_limit_bytes"))
def actor_forward(state, w1_bf, b1_f, w2_bf, b2_p, *, n_actions,
                  block_b=512, vmem_limit_bytes=32 * 1024 * 1024):
    """Forward pass. state: [B, D_in] (any float dtype); params from
    prepare_actor_params(). Returns action probabilities [B, n_actions] f32."""
    state = state.astype(jnp.float32)
    B, D_in = state.shape
    F1 = w1_bf.shape[1]
    A_pad = w2_bf.shape[1]
    assert w1_bf.shape == (D_in, F1) and b1_f.shape == (1, F1)
    assert b2_p.shape == (1, A_pad) and n_actions <= A_pad

    # --- Batch tiling: TB multiple of 8 sublanes; no materialized state pad,
    #     the (possible) ragged last tile's garbage rows are discarded below.
    TB = _round_up(min(block_b, _round_up(B, 8)), 8)
    # Force >= 2 grid steps for small batches so both v7x TensorCores are used
    # (no effect on v5e/v6e which have a single TC per chip).
    if pl.cdiv(B, TB) < 2 and B > 8:
        TB = _round_up(pl.cdiv(B, 2), 8)
    grid = (pl.cdiv(B, TB),)

    vmem = pltpu.MemorySpace.VMEM
    resident = pl.Buffered(1)  # constant index_map -> no second buffer needed

    out = pl.pallas_call(
        actor_kernel,
        out_shape=jax.ShapeDtypeStruct((B, A_pad), jnp.float32),
        grid=grid,
        in_specs=[
            # state tile streams over the batch grid axis (double-buffered)
            pl.BlockSpec((TB, D_in), lambda i: (i, 0), memory_space=vmem),
            # weights & biases: VMEM-resident, DMA'd once, single-buffered
            pl.BlockSpec((D_in, F1), lambda i: (0, 0), memory_space=vmem,
                         pipeline_mode=resident),
            pl.BlockSpec((1, F1), lambda i: (0, 0), memory_space=vmem,
                         pipeline_mode=resident),
            pl.BlockSpec((F1, A_pad), lambda i: (0, 0), memory_space=vmem,
                         pipeline_mode=resident),
            pl.BlockSpec((1, A_pad), lambda i: (0, 0), memory_space=vmem,
                         pipeline_mode=resident),
        ],
        out_specs=pl.BlockSpec((TB, A_pad), lambda i: (i, 0), memory_space=vmem),
        compiler_params=pltpu.CompilerParams(
            dimension_semantics=("parallel",),   # shard batch tiles across TCs
            vmem_limit_bytes=vmem_limit_bytes,
        ),
    )(state, w1_bf, b1_f, w2_bf, b2_p)

    return out[:, :n_actions]


def init_linear_params(key, fan_in, fan_out):
    """PyTorch-style nn.Linear init: U(-1/sqrt(fan_in), 1/sqrt(fan_in)).
    Weight returned as [fan_in, fan_out] (already transposed for x @ W)."""
    kw, kb = jax.random.split(key)
    bound = 1.0 / jnp.sqrt(fan_in)
    w = jax.random.uniform(kw, (fan_in, fan_out), jnp.float32, -bound, bound)
    b = jax.random.uniform(kb, (1, fan_out), jnp.float32, -bound, bound)
    return w, b


if __name__ == "__main__":
    # Shapes consistent with Actor(alpha, input_dims=(16,), n_actions=4)
    # (fc1_dims keeps the module default of 256).
    batch = 64
    input_dims = 16
    fc1_dims = 256
    n_actions = 4

    key = jax.random.PRNGKey(0)
    k_state, k_fc1, k_pi = jax.random.split(key, 3)

    state = jax.random.normal(k_state, (batch, input_dims), jnp.float32)
    w1, b1 = init_linear_params(k_fc1, input_dims, fc1_dims)
    w2, b2 = init_linear_params(k_pi, fc1_dims, n_actions)

    # One-time parameter prep (hoisted out of the per-call path).
    w1_bf, b1_f, w2_bf, b2_p, A = prepare_actor_params(w1, b1, w2, b2)

    # B=64 with the small-batch split -> TB=32, grid=(2,): exercises the
    # pipelined batch grid and both TensorCores on v7x.
    probs = actor_forward(state, w1_bf, b1_f, w2_bf, b2_p, n_actions=A)
    jax.block_until_ready(probs)

    # Pure-JAX reference using the same bf16 weights/activations (f32 accum),
    # so kernel and reference differ only by rounding of identical math.
    h_ref = jnp.maximum(
        jnp.dot(state.astype(jnp.bfloat16), w1_bf,
                preferred_element_type=jnp.float32) + b1, 0.0)
    logits_ref = jnp.dot(h_ref.astype(jnp.bfloat16), w2.astype(jnp.bfloat16),
                         preferred_element_type=jnp.float32) + b2
    ref = jax.nn.softmax(logits_ref, axis=-1)

    assert probs.shape == (batch, n_actions)
    assert bool(jnp.all(jnp.isfinite(probs)))
    assert jnp.allclose(probs, ref, atol=2e-3, rtol=2e-3), \
        float(jnp.max(jnp.abs(probs - ref)))
    # Exact division -> row sums are 1 up to f32 roundoff.
    assert jnp.allclose(jnp.sum(probs, axis=-1), 1.0, atol=1e-4)

    print("KERNEL_OK")
</pallas_src>

<mosaic_0001>
module attributes {stable_mosaic.version = 11 : i64} {
  func.func @actor_kernel(%arg0: i32, %arg1: memref<32x16xf32, #tpu.memory_space<vmem>>, %arg2: memref<16x256xbf16, #tpu.memory_space<vmem>>, %arg3: memref<1x256xf32, #tpu.memory_space<vmem>>, %arg4: memref<256x128xbf16, #tpu.memory_space<vmem>>, %arg5: memref<1x128xf32, #tpu.memory_space<vmem>>, %arg6: memref<32x128xf32, #tpu.memory_space<vmem>>) attributes {dimension_semantics = [#tpu.dimension_semantics<parallel>], iteration_bounds = array<i64: 2>, scalar_prefetch = 0 : i64, scratch_operands = 0 : i64, tpu.core_type = #tpu.core_type<tc>, window_params = [{transform_indices = @transform_0, window_bounds = array<i64: 32, 16>}, {pipeline_mode = #tpu.pipeline_mode<synchronous>, transform_indices = @transform_1, window_bounds = array<i64: 16, 256>}, {pipeline_mode = #tpu.pipeline_mode<synchronous>, transform_indices = @transform_2, window_bounds = array<i64: 1, 256>}, {pipeline_mode = #tpu.pipeline_mode<synchronous>, transform_indices = @transform_3, window_bounds = array<i64: 256, 128>}, {pipeline_mode = #tpu.pipeline_mode<synchronous>, transform_indices = @transform_4, window_bounds = array<i64: 1, 128>}, {transform_indices = @transform_5, window_bounds = array<i64: 32, 128>}]} {
    %c0 = arith.constant 0 : index
    %c0_0 = arith.constant 0 : index
    %0 = vector.load %arg1[%c0, %c0_0] : memref<32x16xf32, #tpu.memory_space<vmem>>, vector<32x16xf32>
    %1 = arith.truncf %0 : vector<32x16xf32> to vector<32x16xbf16>
    %c0_1 = arith.constant 0 : index
    %c0_2 = arith.constant 0 : index
    %2 = vector.load %arg2[%c0_1, %c0_2] : memref<16x256xbf16, #tpu.memory_space<vmem>>, vector<16x256xbf16>
    %cst = arith.constant dense<0.000000e+00> : vector<32x256xf32>
    %3 = tpu.matmul %1, %2, %cst {dimension_numbers = #tpu.dot_dimension_numbers<[1], [0], [0], [1], [0, 0, 1, 1], [], []>} : vector<32x16xbf16>, vector<16x256xbf16>, vector<32x256xf32> -> vector<32x256xf32>
    %c0_3 = arith.constant 0 : index
    %c0_4 = arith.constant 0 : index
    %4 = vector.load %arg3[%c0_3, %c0_4] : memref<1x256xf32, #tpu.memory_space<vmem>>, vector<1x256xf32>
    %5 = vector.broadcast %4 : vector<1x256xf32> to vector<32x256xf32>
    %6 = arith.addf %3, %5 : vector<32x256xf32>
    %cst_5 = arith.constant 0.000000e+00 : f32
    %7 = vector.broadcast %cst_5 : f32 to vector<32x256xf32>
    %8 = arith.maximumf %6, %7 : vector<32x256xf32>
    %9 = arith.truncf %8 : vector<32x256xf32> to vector<32x256xbf16>
    %c0_6 = arith.constant 0 : index
    %c0_7 = arith.constant 0 : index
    %10 = vector.load %arg4[%c0_6, %c0_7] : memref<256x128xbf16, #tpu.memory_space<vmem>>, vector<256x128xbf16>
    %cst_8 = arith.constant dense<0.000000e+00> : vector<32x128xf32>
    %11 = tpu.matmul %9, %10, %cst_8 {dimension_numbers = #tpu.dot_dimension_numbers<[1], [0], [0], [1], [0, 0, 1, 1], [], []>} : vector<32x256xbf16>, vector<256x128xbf16>, vector<32x128xf32> -> vector<32x128xf32>
    %c0_9 = arith.constant 0 : index
    %c0_10 = arith.constant 0 : index
    %12 = vector.load %arg5[%c0_9, %c0_10] : memref<1x128xf32, #tpu.memory_space<vmem>>, vector<1x128xf32>
    %13 = vector.broadcast %12 : vector<1x128xf32> to vector<32x128xf32>
    %14 = arith.addf %11, %13 : vector<32x128xf32>
    %cst_11 = arith.constant dense<0xFF800000> : vector<32xf32>
    %15 = vector.multi_reduction <maximumf>, %14, %cst_11 [1] : vector<32x128xf32> to vector<32xf32>
    %16 = vector.shape_cast %15 : vector<32xf32> to vector<32x1xf32>
    %17 = vector.broadcast %16 : vector<32x1xf32> to vector<32x128xf32>
    %18 = arith.subf %14, %17 : vector<32x128xf32>
    %19 = math.exp %18 : vector<32x128xf32>
    %cst_12 = arith.constant dense<0.000000e+00> : vector<32xf32>
    %20 = vector.multi_reduction <add>, %19, %cst_12 [1] : vector<32x128xf32> to vector<32xf32>
    %21 = vector.shape_cast %20 : vector<32xf32> to vector<32x1xf32>
    %22 = vector.broadcast %21 : vector<32x1xf32> to vector<32x128xf32>
    %23 = arith.divf %19, %22 : vector<32x128xf32>
    %c0_13 = arith.constant 0 : index
    %c0_14 = arith.constant 0 : index
    %24 = vector.load %arg6[%c0_13, %c0_14] : memref<32x128xf32, #tpu.memory_space<vmem>>, vector<32x128xf32>
    tpu.vector_store %arg6[%c0_13, %c0_14], %23 {strides = array<i32>} : memref<32x128xf32, #tpu.memory_space<vmem>>, vector<32x128xf32>,
    return
  }
  func.func @transform_0(%arg0: i32) -> (i32, i32) {
    %c0_i32 = arith.constant 0 : i32
    %c0_i32_0 = arith.constant 0 : i32
    return %arg0, %c0_i32 : i32, i32
  }
  func.func @transform_1(%arg0: i32) -> (i32, i32) {
    %c0_i32 = arith.constant 0 : i32
    %c0_i32_0 = arith.constant 0 : i32
    %c0_i32_1 = arith.constant 0 : i32
    return %c0_i32, %c0_i32_0 : i32, i32
  }
  func.func @transform_2(%arg0: i32) -> (i32, i32) {
    %c0_i32 = arith.constant 0 : i32
    %c0_i32_0 = arith.constant 0 : i32
    %c0_i32_1 = arith.constant 0 : i32
    return %c0_i32, %c0_i32_0 : i32, i32
  }
  func.func @transform_3(%arg0: i32) -> (i32, i32) {
    %c0_i32 = arith.constant 0 : i32
    %c0_i32_0 = arith.constant 0 : i32
    %c0_i32_1 = arith.constant 0 : i32
    return %c0_i32, %c0_i32_0 : i32, i32
  }
  func.func @transform_4(%arg0: i32) -> (i32, i32) {
    %c0_i32 = arith.constant 0 : i32
    %c0_i32_0 = arith.constant 0 : i32
    %c0_i32_1 = arith.constant 0 : i32
    return %c0_i32, %c0_i32_0 : i32, i32
  }
  func.func @transform_5(%arg0: i32) -> (i32, i32) {
    %c0_i32 = arith.constant 0 : i32
    %c0_i32_0 = arith.constant 0 : i32
    return %arg0, %c0_i32 : i32, i32
  }
}

</mosaic_0001>

<llo_original>
// kernel: actor_forward.1
$region0: #{actor_forward.1}
  #allocation0 [shape = 'u32[]', space=smem, size = 0x4, offset = 0x4, fixed_abs, tag = 'smem constant byte address 0x4 - core index']
  #allocation1 [shape = 'u32[144,128]{1,0:T(1,128)}', space=vmem, size = 0x12000, scoped, tag = 'internal scratch']
  %s0 = inlined_call_operand.vmem [shape: f32[64,16], index: 0, kind: input, shape index: {}]
  %s1 = inlined_call_operand.vmem [shape: bf16[16,256], index: 1, kind: input, shape index: {}]
  %s2 = inlined_call_operand.vmem [shape: f32[1,256], index: 2, kind: input, shape index: {}]
  %s3 = inlined_call_operand.hbm [shape: bf16[256,128], index: 3, kind: input, shape index: {}]
  %s4 = inlined_call_operand.vmem [shape: f32[1,128], index: 4, kind: input, shape index: {}]
  %s5 = inlined_call_operand.vmem [shape: f32[64,128], index: 5, kind: output, shape index: {}]
  %s6 = sld [smem:[#allocation0]]
  $region57: #{actor_forward.1} parent=0
    _
  %s8 = ssub.s32 1, %s6
  %s9 = scalar_select 0, %s8, %s6
  $region1: #{actor_forward.1} parent=0
    #allocation2 [shape = 'u8[65536]{0}', space=vmem, size = 0x10000, scoped, tag = 'input window, operand 3, single buffered']
    #allocation3 [shape = 's32[2]{0}', space=sflag, size = 0x8, scoped, tag = 'scoped memory for actor_forward.1']
    %10 = vsyncpa [#allocation3], 0
    loop: start=0, step=1, limit=4
    $region2: #{actor_forward.1} parent=1 // loop_pre_header
      _
    $region3: #{actor_forward.1} parent=1 // loop_header
      %s12 = sphi 0, %s16
      %p13 = scmp.ge.s32.totalorder %s12, 4
      %s22 = sphi 0, %s24
      %s25 = sphi 0, %s22
      %s26 = sphi 0, %s25
      %s42 = sphi 0, %s26
      %s46 = sphi 0, %s46
      %s48 = sphi 0, %s46
      %s49 = sphi 0, %s48
      %s63 = sphi 0, %s49
      %s67 = sphi 0, %s67
      %s69 = sphi 0, %s67
      %s70 = sphi 0, %s69
      %s84 = sphi 0, %s70
      %s88 = sphi 0, %s88
      %s90 = sphi 0, %s88
      %s91 = sphi 0, %s90
      %s105 = sphi 0, %s91
      %s109 = sphi 0, %s109
      %s111 = sphi 0, %s109
      %s112 = sphi 0, %s111
      %s126 = sphi 0, %s112
      %s132 = sphi 0, %s134
      %s135 = sphi 0, %s132
      %s136 = sphi 0, %s135
      %s152 = sphi 0, %s136
    $region4: #{actor_forward.1} parent=1 // loop_header_branch
      %15 = sbr.rel (%p13) target = $region8
    $region5: #{actor_forward.1} parent=1 // loop_body
      %s17 = ssub.s32 %s12, 1
      %s18 = ssub.s32 %s12, 2
      %s19 = sadd.s32 %s12, 1
      %s20 = ssub.s32 %s12, %s19
      %p21 = scmp.eq.s32.totalorder %s20, 0
      %s23 = sadd.s32 %s22, 1
      %s24 = scalar_select %p21, %s22, %s23
      %p27 = pneg %p21
      %p28 = scmp.eq.s32.totalorder %s12, 1
      %p29 = por %p27, %p28
      %p30 = scmp.ne.s32.totalorder %s22, %s25
      %p31 = scmp.eq.s32.totalorder %s12, 0
      %p32 = por %p30, %p31
      %p33 = scmp.ne.s32.totalorder %s22, %s25
      %p34 = scmp.eq.s32.totalorder %s17, 1
      %p35 = por %p33, %p34
      %p36 = scmp.ne.s32.totalorder %s25, %s26
      %p37 = scmp.eq.s32.totalorder %s17, 0
      %p38 = por %p36, %p37
      %p39 = scmp.ne.s32.totalorder %s25, %s26
      %p40 = scmp.eq.s32.totalorder %s18, 1
      %p41 = por %p39, %p40
      %p43 = scmp.ne.s32.totalorder %s26, %s42
      %p44 = scmp.eq.s32.totalorder %s18, 0
      %p45 = por %p43, %p44
      %s47 = sadd.s32 %s46, 1
      %p50 = scmp.eq.s32.totalorder %s12, 1
      %p51 = scmp.ne.s32.totalorder %s46, %s48
      %p52 = scmp.eq.s32.totalorder %s12, 0
      %p53 = por %p51, %p52
      %p54 = scmp.ne.s32.totalorder %s46, %s48
      %p55 = scmp.eq.s32.totalorder %s17, 1
      %p56 = por %p54, %p55
      %p57 = scmp.ne.s32.totalorder %s48, %s49
      %p58 = scmp.eq.s32.totalorder %s17, 0
      %p59 = por %p57, %p58
      %p60 = scmp.ne.s32.totalorder %s48, %s49
      %p61 = scmp.eq.s32.totalorder %s18, 1
      %p62 = por %p60, %p61
      %p64 = scmp.ne.s32.totalorder %s49, %s63
      %p65 = scmp.eq.s32.totalorder %s18, 0
      %p66 = por %p64, %p65
      %s68 = sadd.s32 %s67, 1
      %p71 = scmp.eq.s32.totalorder %s12, 1
      %p72 = scmp.ne.s32.totalorder %s67, %s69
      %p73 = scmp.eq.s32.totalorder %s12, 0
      %p74 = por %p72, %p73
      %p75 = scmp.ne.s32.totalorder %s67, %s69
      %p76 = scmp.eq.s32.totalorder %s17, 1
      %p77 = por %p75, %p76
      %p78 = scmp.ne.s32.totalorder %s69, %s70
      %p79 = scmp.eq.s32.totalorder %s17, 0
      %p80 = por %p78, %p79
      %p81 = scmp.ne.s32.totalorder %s69, %s70
      %p82 = scmp.eq.s32.totalorder %s18, 1
      %p83 = por %p81, %p82
      %p85 = scmp.ne.s32.totalorder %s70, %s84
      %p86 = scmp.eq.s32.totalorder %s18, 0
      %p87 = por %p85, %p86
      %s89 = sadd.s32 %s88, 1
      %p92 = scmp.eq.s32.totalorder %s12, 1
      %p93 = scmp.ne.s32.totalorder %s88, %s90
      %p94 = scmp.eq.s32.totalorder %s12, 0
      %p95 = por %p93, %p94
      %p96 = scmp.ne.s32.totalorder %s88, %s90
      %p97 = scmp.eq.s32.totalorder %s17, 1
      %p98 = por %p96, %p97
      %p99 = scmp.ne.s32.totalorder %s90, %s91
      %p100 = scmp.eq.s32.totalorder %s17, 0
      %p101 = por %p99, %p100
      %p102 = scmp.ne.s32.totalorder %s90, %s91
      %p103 = scmp.eq.s32.totalorder %s18, 1
      %p104 = por %p102, %p103
      %p106 = scmp.ne.s32.totalorder %s91, %s105
      %p107 = scmp.eq.s32.totalorder %s18, 0
      %p108 = por %p106, %p107
      %s110 = sadd.s32 %s109, 1
      %p113 = scmp.eq.s32.totalorder %s12, 1
      %p114 = scmp.ne.s32.totalorder %s109, %s111
      %p115 = scmp.eq.s32.totalorder %s12, 0
      %p116 = por %p114, %p115
      %p117 = scmp.ne.s32.totalorder %s109, %s111
      %p118 = scmp.eq.s32.totalorder %s17, 1
      %p119 = por %p117, %p118
      %p120 = scmp.ne.s32.totalorder %s111, %s112
      %p121 = scmp.eq.s32.totalorder %s17, 0
      %p122 = por %p120, %p121
      %p123 = scmp.ne.s32.totalorder %s111, %s112
      %p124 = scmp.eq.s32.totalorder %s18, 1
      %p125 = por %p123, %p124
      %p127 = scmp.ne.s32.totalorder %s112, %s126
      %p128 = scmp.eq.s32.totalorder %s18, 0
      %p129 = por %p127, %p128
      %s130 = ssub.s32 %s12, %s19
      %p131 = scmp.eq.s32.totalorder %s130, 0
      %s133 = sadd.s32 %s132, 1
      %s134 = scalar_select %p131, %s132, %s133
      %p137 = pneg %p131
      %p138 = scmp.eq.s32.totalorder %s12, 1
      %p139 = por %p137, %p138
      %p140 = scmp.ne.s32.totalorder %s132, %s135
      %p141 = scmp.eq.s32.totalorder %s12, 0
      %p142 = por %p140, %p141
      %p143 = scmp.ne.s32.totalorder %s132, %s135
      %p144 = scmp.eq.s32.totalorder %s17, 1
      %p145 = por %p143, %p144
      %p146 = scmp.ne.s32.totalorder %s135, %s136
      %p147 = scmp.eq.s32.totalorder %s17, 0
      %p148 = por %p146, %p147
      %p149 = scmp.ne.s32.totalorder %s135, %s136
      %p150 = scmp.eq.s32.totalorder %s18, 1
      %p151 = por %p149, %p150
      %p153 = scmp.ne.s32.totalorder %s136, %s152
      %p154 = scmp.eq.s32.totalorder %s18, 0
      %p155 = por %p153, %p154
      %p156 = scmp.le.s32.totalorder 1, %s12
      %p157 = scmp.lt.s32.totalorder %s12, 3
      %p158 = pnand %p156, %p157
      %p159 = pneg %p158
      // Predicated region
      $region9: #{actor_forward.1} parent=5 // pred_check
        _
      $region10: #{actor_forward.1} parent=5 // pred_check_branch
        %161 = sbr.rel (%p158) target = $region12
      $region11: #{actor_forward.1} parent=5 // pred_region
        %s162 = ssub.s32 %s12, 1
        // Predicated region
        $region13: #{actor_forward.1} parent=11 // pred_check
          %p163 = pneg %p59
        $region14: #{actor_forward.1} parent=11 // pred_check_branch
          %165 = sbr.rel (%p163) target = $region16
        $region15: #{actor_forward.1} parent=11 // pred_region
          _
        $region16: #{actor_forward.1} parent=11 // pred_fallthru
          _
        // Predicated region
        $region17: #{actor_forward.1} parent=11 // pred_check
          %p166 = pneg %p80
        $region18: #{actor_forward.1} parent=11 // pred_check_branch
          %168 = sbr.rel (%p166) target = $region20
        $region19: #{actor_forward.1} parent=11 // pred_region
          _
        $region20: #{actor_forward.1} parent=11 // pred_fallthru
          _
        // Predicated region
        $region21: #{actor_forward.1} parent=11 // pred_check
          %p169 = pneg %p101
        $region22: #{actor_forward.1} parent=11 // pred_check_branch
          %171 = sbr.rel (%p169) target = $region24
        $region23: #{actor_forward.1} parent=11 // pred_region
          %s173 = ssub.s32 2048, 2048
          %174 = vsyncadd [#allocation3], %s173
          %s175 = sshll.u32 [#allocation2], 4
          %s176 = int_to_ptr.vmem [resolvable:$true] %s175
          %181 = dma.hbm_to_vmem [thread:$0]  %s3, 2048, %s176, [#allocation3], 64, 64, 4
        $region24: #{actor_forward.1} parent=11 // pred_fallthru
          _
        // Predicated region
        $region25: #{actor_forward.1} parent=11 // pred_check
          %p182 = pneg %p122
        $region26: #{actor_forward.1} parent=11 // pred_check_branch
          %184 = sbr.rel (%p182) target = $region28
        $region27: #{actor_forward.1} parent=11 // pred_region
          _
        $region28: #{actor_forward.1} parent=11 // pred_fallthru
          _
      $region12: #{actor_forward.1} parent=5 // pred_fallthru
        _
      %p185 = scmp.lt.s32.totalorder %s12, 2
      // Predicated region
      $region29: #{actor_forward.1} parent=5 // pred_check
        %p186 = pneg %p185
      $region30: #{actor_forward.1} parent=5 // pred_check_branch
        %188 = sbr.rel (%p186) target = $region32
      $region31: #{actor_forward.1} parent=5 // pred_region
        // Predicated region
        $region33: #{actor_forward.1} parent=31 // pred_check
          %p189 = pneg %p32
        $region34: #{actor_forward.1} parent=31 // pred_check_branch
          %191 = sbr.rel (%p189) target = $region36
        $region35: #{actor_forward.1} parent=31 // pred_region
          %s192 = smul.u32 4, %s12
          %p193 = scmp.lt.s32.totalorder %s192, 7
          %s194 = scalar_select %p193, %s192, 7
          %s195 = smul.addr %s194, 8
          %s196 = scalar_lea.vmem %s0, %s195
          %s197 = smul.u32 4, %s12
        $region36: #{actor_forward.1} parent=31 // pred_fallthru
          _
      $region32: #{actor_forward.1} parent=5 // pred_fallthru
        _
      %p198 = scmp.le.s32.totalorder 1, %s12
      %p199 = scmp.lt.s32.totalorder %s12, 3
      %p200 = pnand %p198, %p199
      %p201 = pneg %p200
      // Predicated region
      $region37: #{actor_forward.1} parent=5 // pred_check
        _
      $region38: #{actor_forward.1} parent=5 // pred_check_branch
        %203 = sbr.rel (%p200) target = $region40
      $region39: #{actor_forward.1} parent=5 // pred_region
        %s204 = ssub.s32 %s12, 1
        // Predicated region
        $region41: #{actor_forward.1} parent=39 // pred_check
          %p205 = pneg %p101
        $region42: #{actor_forward.1} parent=39 // pred_check_branch
          %207 = sbr.rel (%p205) target = $region44
        $region43: #{actor_forward.1} parent=39 // pred_region
          %208 = dma.done [#allocation3], 2048
        $region44: #{actor_forward.1} parent=39 // pred_fallthru
          _
        %s209 = smul.u32 4, %s17
        %p210 = scmp.lt.s32.totalorder %s209, 7
        %s211 = scalar_select %p210, %s209, 7
        %s212 = smul.addr %s211, 8
        %s213 = scalar_lea.vmem %s0, %s212
        %p214 = pneg %p38
        %p215 = pneg %p35
        %p216 = pneg %p59
        %p217 = pneg %p56
        %p218 = pneg %p80
        %p219 = pneg %p77
        %p220 = pneg %p101
        %p221 = pneg %p98
        %p222 = pneg %p122
        %p223 = pneg %p119
        %p224 = pneg %p148
        %p225 = pneg %p145
        %s226 = smul.u32 4, %s17
        %p227 = scmp.lt.s32.totalorder %s226, 7
        %s228 = scalar_select %p227, %s226, 7
        %s229 = smul.addr %s228, 8
        %s230 = scalar_lea.vmem %s5, %s229
        %s231 = smul.u32 4, %s17
        %p232 = scmp.lt.s32.totalorder %s231, 7
        %s233 = scalar_select %p232, %s231, 7
        %s234 = smul.addr %s233, 8
        %s235 = scalar_lea.vmem %s0, %s234
        %s236 = smul.u32 4, %s17
        %s237 = smul.u32 4, %s17
        %p238 = scmp.lt.s32.totalorder %s237, 7
        %s239 = scalar_select %p238, %s237, 7
        %s240 = smul.addr %s239, 8
        %s241 = scalar_lea.vmem %s5, %s240
        %s242 = smul.u32 4, %s17
        %v244 = vld [vmem:[%s235] sm:$0xff]
        %v245 = vld [vmem:[%s235 + $0x8] sm:$0xff]
        %v246 = vld [vmem:[%s235 + $0x10] sm:$0xff]
        %v247 = vld [vmem:[%s235 + $0x18] sm:$0xff]
        %v248 = vpack.c.bf16 %v245, %v244
        %v249 = vpack.c.bf16 %v247, %v246
        %v250 = vld [vmem:[%s1] sm:$0xff]
        %v251 = vld [vmem:[%s1 + $0x8] sm:$0xff]
        %v252 = vld [vmem:[%s2] sm:$0x3]
        %v254 = vlaneseq
        %v255 = vshrl.u32 %v254, 7
        %v256 = vsub.s32 0, %v255
        %v257 = vrot.slane %v252, %v256
        %v258 = vlaneseq
        %v259 = vshrl.u32 %v258, 7
        %v260 = vsub.s32 1, %v259
        %v261 = vrot.slane %v252, %v260
        %v266 = vunpack.c.l.b16 %v250
        %v267 = vunpack.c.h.b16 %v250
        %v268 = vunpack.c.l.b16 %v251
        %v269 = vunpack.c.h.b16 %v251
        %v270 = vpack.c.b16 %v268, %v266
        %v271 = vpack.c.b16 %v269, %v267
        %vm274 = vcmask 130048
        %v276 = vsel %vm274, %v248, 0
        %v279 = vsel %vm274, %v249, 0
        %281 = vmatprep.subr.bf16.mxu0 0
        %282 = vmatpush1.bf16.msra.mxu0 0
        %283 = vmatprep.subr.bf16.mxu0 0
        %284 = vmatpush1.bf16.msra.mxu0 0
        %285 = vmatprep.subr.bf16.mxu0 0
        %286 = vmatpush1.bf16.msra.mxu0 0
        %287 = vmatprep.subr.bf16.mxu0 0
        %288 = vmatpush1.bf16.msra.mxu0 0
        %289 = vmatprep.subr.bf16.mxu0 0
        %290 = vmatpush1.bf16.msra.mxu0 0
        %291 = vmatprep.subr.bf16.mxu0 0
        %292 = vmatpush1.bf16.msra.mxu0 0
        %293 = vmatprep.subr.bf16.mxu0 0
        %294 = vmatpush1.bf16.msra.mxu0 0
        %295 = vmatprep.subr.bf16.mxu0 %v271
        %296 = vmatpush1.bf16.msra.mxu0 %v270
        %297 = vmatprep.subr.bf16.mxu0 0
        %298 = vmatpush2.bf16.msra.mxu0 0
        %299 = vmatprep.subr.bf16.mxu0 0
        %300 = vmatpush2.bf16.msra.mxu0 0
        %301 = vmatprep.subr.bf16.mxu0 0
        %302 = vmatpush2.bf16.msra.mxu0 0
        %303 = vmatprep.subr.bf16.mxu0 0
        %304 = vmatpush2.bf16.msra.mxu0 0
        %305 = vmatprep.subr.bf16.mxu0 0
        %306 = vmatpush2.bf16.msra.mxu0 0
        %307 = vmatprep.subr.bf16.mxu0 0
        %308 = vmatpush2.bf16.msra.mxu0 0
        %309 = vmatprep.subr.bf16.mxu0 0
        %310 = vmatpush2.bf16.msra.mxu0 0
        %311 = vmatprep.subr.bf16.mxu0 0
        %312 = vmatpush2.bf16.msra.mxu0 0
        %313 = vmatprep.mubr.bf16.mxu0 0
        %314 = vmatmul.mubr.bf16.gmra.mxu0 %v276
        %v315 = vpop.f32.mrf.mxu0
        %v316 = vadd.f32 %v257, %v315
        %v317 = vpop.f32.mrf.mxu0
        %v318 = vadd.f32 %v261, %v317
        %v319 = vpop.f32.mrf.mxu0
        %v320 = vadd.f32 %v257, %v319
        %v321 = vpop.f32.mrf.mxu0
        %v322 = vadd.f32 %v261, %v321
        %323 = vmatprep.mubr.bf16.mxu0 0
        %324 = vmatmul.mubr.bf16.gmra.mxu0 %v279
        %v325 = vpop.f32.mrf.mxu0
        %v326 = vadd.f32 %v257, %v325
        %v327 = vpop.f32.mrf.mxu0
        %v328 = vadd.f32 %v261, %v327
        %v329 = vpop.f32.mrf.mxu0
        %v330 = vadd.f32 %v257, %v329
        %v331 = vpop.f32.mrf.mxu0
        %v332 = vadd.f32 %v261, %v331
        %333 = vdwg.mxu0
        %v334 = vmax.f32 %v316, 0.0
        %v335 = vmax.f32 %v318, 0.0
        %v336 = vmax.f32 %v320, 0.0
        %v337 = vmax.f32 %v322, 0.0
        %v338 = vmax.f32 %v326, 0.0
        %v339 = vmax.f32 %v328, 0.0
        %v340 = vmax.f32 %v330, 0.0
        %v341 = vmax.f32 %v332, 0.0
        %v342 = vpack.c.bf16 %v336, %v334
        %v343 = vpack.c.bf16 %v337, %v335
        %v344 = vpack.c.bf16 %v340, %v338
        %v345 = vpack.c.bf16 %v341, %v339
        %v346 = vld [vmem:[#allocation2] sm:$0xf]
        %v347 = vld [vmem:[#allocation2 + $0x4] sm:$0xf]
        %v348 = vld [vmem:[#allocation2 + $0x8] sm:$0xf]
        %v349 = vld [vmem:[#allocation2 + $0xc] sm:$0xf]
        %v350 = vld [vmem:[#allocation2 + $0x10] sm:$0xf]
        %v351 = vld [vmem:[#allocation2 + $0x14] sm:$0xf]
        %v352 = vld [vmem:[#allocation2 + $0x18] sm:$0xf]
        %v353 = vld [vmem:[#allocation2 + $0x1c] sm:$0xf]
        %v354 = vld [vmem:[#allocation2 + $0x20] sm:$0xf]
        %v355 = vld [vmem:[#allocation2 + $0x24] sm:$0xf]
        %v356 = vld [vmem:[#allocation2 + $0x28] sm:$0xf]
        %v357 = vld [vmem:[#allocation2 + $0x2c] sm:$0xf]
        %v358 = vld [vmem:[#allocation2 + $0x30] sm:$0xf]
        %v359 = vld [vmem:[#allocation2 + $0x34] sm:$0xf]
        %v360 = vld [vmem:[#allocation2 + $0x38] sm:$0xf]
        %v361 = vld [vmem:[#allocation2 + $0x3c] sm:$0xf]
        %v362 = vld [vmem:[#allocation2 + $0x40] sm:$0xf]
        %v363 = vld [vmem:[#allocation2 + $0x44] sm:$0xf]
        %v364 = vld [vmem:[#allocation2 + $0x48] sm:$0xf]
        %v365 = vld [vmem:[#allocation2 + $0x4c] sm:$0xf]
        %v366 = vld [vmem:[#allocation2 + $0x50] sm:$0xf]
        %v367 = vld [vmem:[#allocation2 + $0x54] sm:$0xf]
        %v368 = vld [vmem:[#allocation2 + $0x58] sm:$0xf]
        %v369 = vld [vmem:[#allocation2 + $0x5c] sm:$0xf]
        %v370 = vld [vmem:[#allocation2 + $0x60] sm:$0xf]
        %v371 = vld [vmem:[#allocation2 + $0x64] sm:$0xf]
        %v372 = vld [vmem:[#allocation2 + $0x68] sm:$0xf]
        %v373 = vld [vmem:[#allocation2 + $0x6c] sm:$0xf]
        %v374 = vld [vmem:[#allocation2 + $0x70] sm:$0xf]
        %v375 = vld [vmem:[#allocation2 + $0x74] sm:$0xf]
        %v376 = vld [vmem:[#allocation2 + $0x78] sm:$0xf]
        %v377 = vld [vmem:[#allocation2 + $0x7c] sm:$0xf]
        %v378 = vld [vmem:[%s4] sm:$0x1]
        %v380 = vlaneseq
        %v381 = vshrl.u32 %v380, 7
        %v382 = vsub.s32 0, %v381
        %v383 = vrot.slane %v378, %v382
        %v417 = vunpack.c.l.b16 %v346
        %v418 = vunpack.c.l.b16 %v347
        %v419 = vunpack.c.l.b16 %v348
        %v420 = vunpack.c.l.b16 %v349
        %v421 = vunpack.c.l.b16 %v350
        %v422 = vunpack.c.l.b16 %v351
        %v423 = vunpack.c.l.b16 %v352
        %v424 = vunpack.c.l.b16 %v353
        %v425 = vunpack.c.l.b16 %v354
        %v426 = vunpack.c.l.b16 %v355
        %v427 = vunpack.c.l.b16 %v356
        %v428 = vunpack.c.l.b16 %v357
        %v429 = vunpack.c.l.b16 %v358
        %v430 = vunpack.c.l.b16 %v359
        %v431 = vunpack.c.l.b16 %v360
        %v432 = vunpack.c.l.b16 %v361
        %v433 = vunpack.c.l.b16 %v362
        %v434 = vunpack.c.l.b16 %v363
        %v435 = vunpack.c.l.b16 %v364
        %v436 = vunpack.c.l.b16 %v365
        %v437 = vunpack.c.l.b16 %v366
        %v438 = vunpack.c.l.b16 %v367
        %v439 = vunpack.c.l.b16 %v368
        %v440 = vunpack.c.l.b16 %v369
        %v441 = vunpack.c.l.b16 %v370
        %v442 = vunpack.c.l.b16 %v371
        %v443 = vunpack.c.l.b16 %v372
        %v444 = vunpack.c.l.b16 %v373
        %v445 = vunpack.c.l.b16 %v374
        %v446 = vunpack.c.l.b16 %v375
        %v447 = vunpack.c.l.b16 %v376
        %v448 = vunpack.c.l.b16 %v377
        %v449 = vpack.c.b16 %v418, %v417
        %v450 = vpack.c.b16 %v420, %v419
        %v451 = vpack.c.b16 %v422, %v421
        %v452 = vpack.c.b16 %v424, %v423
        %v453 = vpack.c.b16 %v426, %v425
        %v454 = vpack.c.b16 %v428, %v427
        %v455 = vpack.c.b16 %v430, %v429
        %v456 = vpack.c.b16 %v432, %v431
        %v457 = vpack.c.b16 %v434, %v433
        %v458 = vpack.c.b16 %v436, %v435
        %v459 = vpack.c.b16 %v438, %v437
        %v460 = vpack.c.b16 %v440, %v439
        %v461 = vpack.c.b16 %v442, %v441
        %v462 = vpack.c.b16 %v444, %v443
        %v463 = vpack.c.b16 %v446, %v445
        %v464 = vpack.c.b16 %v448, %v447
        %481 = vmatprep.subr.bf16.mxu0 0
        %482 = vmatpush1.bf16.msra.mxu0 %v456
        %483 = vmatprep.subr.bf16.mxu0 0
        %484 = vmatpush1.bf16.msra.mxu0 %v455
        %485 = vmatprep.subr.bf16.mxu0 0
        %486 = vmatpush1.bf16.msra.mxu0 %v454
        %487 = vmatprep.subr.bf16.mxu0 0
        %488 = vmatpush1.bf16.msra.mxu0 %v453
        %489 = vmatprep.subr.bf16.mxu0 0
        %490 = vmatpush1.bf16.msra.mxu0 %v452
        %491 = vmatprep.subr.bf16.mxu0 0
        %492 = vmatpush1.bf16.msra.mxu0 %v451
        %493 = vmatprep.subr.bf16.mxu0 0
        %494 = vmatpush1.bf16.msra.mxu0 %v450
        %495 = vmatprep.subr.bf16.mxu0 0
        %496 = vmatpush1.bf16.msra.mxu0 %v449
        %497 = vmatprep.subr.bf16.mxu0 0
        %498 = vmatpush2.bf16.msra.mxu0 %v464
        %499 = vmatprep.subr.bf16.mxu0 0
        %500 = vmatpush2.bf16.msra.mxu0 %v463
        %501 = vmatprep.subr.bf16.mxu0 0
        %502 = vmatpush2.bf16.msra.mxu0 %v462
        %503 = vmatprep.subr.bf16.mxu0 0
        %504 = vmatpush2.bf16.msra.mxu0 %v461
        %505 = vmatprep.subr.bf16.mxu0 0
        %506 = vmatpush2.bf16.msra.mxu0 %v460
        %507 = vmatprep.subr.bf16.mxu0 0
        %508 = vmatpush2.bf16.msra.mxu0 %v459
        %509 = vmatprep.subr.bf16.mxu0 0
        %510 = vmatpush2.bf16.msra.mxu0 %v458
        %511 = vmatprep.subr.bf16.mxu0 0
        %512 = vmatpush2.bf16.msra.mxu0 %v457
        %513 = vmatprep.mubr.bf16.mxu0 %v343
        %514 = vmatmul.mubr.bf16.gmra.mxu0 %v342
        %v515 = vpop.f32.mrf.mxu0
        %v516 = vadd.f32 %v383, %v515
        %v517 = vpop.f32.mrf.mxu0
        %v518 = vpop.f32.mrf.mxu0
        %v519 = vadd.f32 %v383, %v518
        %v520 = vpop.f32.mrf.mxu0
        %521 = vmatprep.mubr.bf16.mxu0 %v345
        %522 = vmatmul.mubr.bf16.gmra.mxu0 %v344
        %v523 = vpop.f32.mrf.mxu0
        %v524 = vadd.f32 %v383, %v523
        %v525 = vpop.f32.mrf.mxu0
        %v526 = vpop.f32.mrf.mxu0
        %v527 = vadd.f32 %v383, %v526
        %v528 = vpop.f32.mrf.mxu0
        %529 = vdwg.mxu0
        %530 = vmax.xlane.f32.xlu0 %v516
        %v531 = vpop.xlane.xlu0 %530
        %532 = vmax.xlane.f32.xlu0 %v519
        %v533 = vpop.xlane.xlu0 %532
        %534 = vmax.xlane.f32.xlu0 %v524
        %v535 = vpop.xlane.xlu0 %534
        %536 = vmax.xlane.f32.xlu0 %v527
        %v537 = vpop.xlane.xlu0 %536
        %v538 = vsub.f32 %v516, %v531
        %v539 = vsub.f32 %v519, %v533
        %v540 = vsub.f32 %v524, %v535
        %v541 = vsub.f32 %v527, %v537
        %v542 = vmul.f32 %v538, 1.442695
        %v543 = vpow.pop %v542
        %v544 = vmul.f32 %v539, 1.442695
        %v545 = vpow.pop %v544
        %v546 = vmul.f32 %v540, 1.442695
        %v547 = vpow.pop %v546
        %v548 = vmul.f32 %v541, 1.442695
        %v549 = vpow.pop %v548
        %550 = vadd.xlane.f32.xlu0 %v543
        %v551 = vpop.xlane.xlu0 %550
        %552 = vadd.xlane.f32.xlu0 %v545
        %v553 = vpop.xlane.xlu0 %552
        %554 = vadd.xlane.f32.xlu0 %v547
        %v555 = vpop.xlane.xlu0 %554
        %556 = vadd.xlane.f32.xlu0 %v549
        %v557 = vpop.xlane.xlu0 %556
        %v558 = vrcp.pop %v551
        %v559 = vmul.f32 %v543, %v558
        %v560 = vrcp.pop %v553
        %v561 = vmul.f32 %v545, %v560
        %v562 = vrcp.pop %v555
        %v563 = vmul.f32 %v547, %v562
        %v564 = vrcp.pop %v557
        %v565 = vmul.f32 %v549, %v564
        %566 = vst [vmem:[%s241] sm:$0xff] %v559
        %567 = vst [vmem:[%s241 + $0x8] sm:$0xff] %v561
        %568 = vst [vmem:[%s241 + $0x10] sm:$0xff] %v563
        %569 = vst [vmem:[%s241 + $0x18] sm:$0xff] %v565
        %s570 = smul.u32 4, %s17
        %p571 = scmp.lt.s32.totalorder %s570, 7
        %s572 = scalar_select %p571, %s570, 7
        %s573 = smul.addr %s572, 8
        %s574 = scalar_lea.vmem %s5, %s573
        // Predicated region
        $region45: #{actor_forward.1} parent=39 // pred_check
          %p575 = pneg %p145
        $region46: #{actor_forward.1} parent=39 // pred_check_branch
          %577 = sbr.rel (%p575) target = $region48
        $region47: #{actor_forward.1} parent=39 // pred_region
          %s578 = smul.u32 4, %s17
        $region48: #{actor_forward.1} parent=39 // pred_fallthru
          _
      $region40: #{actor_forward.1} parent=5 // pred_fallthru
        _
      %p579 = scmp.le.s32.totalorder 2, %s12
      // Predicated region
      $region49: #{actor_forward.1} parent=5 // pred_check
        %p580 = pneg %p579
      $region50: #{actor_forward.1} parent=5 // pred_check_branch
        %582 = sbr.rel (%p580) target = $region52
      $region51: #{actor_forward.1} parent=5 // pred_region
        %s583 = ssub.s32 %s12, 2
        // Predicated region
        $region53: #{actor_forward.1} parent=51 // pred_check
          %p584 = pneg %p151
        $region54: #{actor_forward.1} parent=51 // pred_check_branch
          %586 = sbr.rel (%p584) target = $region56
        $region55: #{actor_forward.1} parent=51 // pred_region
          %s587 = smul.u32 4, %s18
          %p588 = scmp.lt.s32.totalorder %s587, 7
          %s589 = scalar_select %p588, %s587, 7
          %s590 = smul.addr %s589, 8
          %s591 = scalar_lea.vmem %s5, %s590
        $region56: #{actor_forward.1} parent=51 // pred_fallthru
          _
      $region52: #{actor_forward.1} parent=5 // pred_fallthru
        _
    $region6: #{actor_forward.1} parent=1 // loop_footer
      %s16 = sadd.s32 1, %s12
    $region7: #{actor_forward.1} parent=1 // loop_footer_branch
      %11 = sbr.rel target = $region3
    $region8: #{actor_forward.1} parent=1 // loop_exit
      _
    %592 = vsyncpa [#allocation3], 1
    %s593 = scalar_lea.sflag [#allocation3], 1
    %594 = vsyncpa %s593, 1

</llo_original>
